<compile_context>
chip_gen: v7x
topology: tpu7x:2x2x1
jax: 0.10.0
libtpu: 0.0.40
codegen_flags: <defaults>
</compile_context>

<pallas_src>
import jax
import jax.numpy as jnp
from jax.experimental import pallas as pl
from jax.experimental.pallas import tpu as pltpu


# ----------------------------------------------------------------------------
# Pallas kernel: TB graphs (M = TB*N rows) per grid step, all layers fused.
# All refs are 2-D; matmul operands are bf16, accumulation f32.
# ----------------------------------------------------------------------------
def _mpnn_encoder_kernel(adj_ref, x_ref,
                         w1_ref, b1_ref, w2_ref, b2_ref,
                         bn1_s_ref, bn1_t_ref, bn2_s_ref, bn2_t_ref,
                         wf1x_ref, wf1h1_ref, wf1h2_ref, bf1_ref,
                         wf2_ref, bf2_ref,
                         out_ref):
    A = adj_ref[...]                      # (M, M)  bf16 block-diag normalized adj
    x = x_ref[...]                        # (M, nfeat) bf16

    # ---- GCN layer 1: A @ (x W1) + b1, relu, BN1 (eval: scale/shift) -------
    h = jnp.dot(x, w1_ref[...], preferred_element_type=jnp.float32)
    h = jnp.dot(A, h.astype(jnp.bfloat16), preferred_element_type=jnp.float32)
    h = jnp.maximum(h + b1_ref[...], 0.0)                       # relu (f32)
    h1_f32 = h * bn1_s_ref[...] + bn1_t_ref[...]                # folded BN1
    h1 = h1_f32.astype(jnp.bfloat16)
    # dropout: identity in eval mode

    # ---- GCN layer 2 -------------------------------------------------------
    h = jnp.dot(h1, w2_ref[...], preferred_element_type=jnp.float32)
    h = jnp.dot(A, h.astype(jnp.bfloat16), preferred_element_type=jnp.float32)
    h = jnp.maximum(h + b2_ref[...], 0.0)
    h2 = (h * bn2_s_ref[...] + bn2_t_ref[...]).astype(jnp.bfloat16)

    # ---- skip "concat" as three accumulating dots + MLP head ---------------
    z = jnp.dot(x, wf1x_ref[...], preferred_element_type=jnp.float32)
    z = z + jnp.dot(h1, wf1h1_ref[...], preferred_element_type=jnp.float32)
    z = z + jnp.dot(h2, wf1h2_ref[...], preferred_element_type=jnp.float32)
    z = jnp.maximum(z + bf1_ref[...], 0.0)
    z = jnp.dot(z.astype(jnp.bfloat16), wf2_ref[...],
                preferred_element_type=jnp.float32)
    z = jnp.maximum(z + bf2_ref[...], 0.0)

    out_ref[...] = z.astype(out_ref.dtype)   # lane-dense (M, 128*k) store


# ----------------------------------------------------------------------------
# Glue: GCN symmetric normalization with self loops (cheap, plain JAX).
# ----------------------------------------------------------------------------
def gcn_normalize(adj):
    n = adj.shape[0]
    a_hat = adj + jnp.eye(n, dtype=adj.dtype)          # self loops (weight 1)
    deg = jnp.sum(a_hat, axis=1)
    d_inv_sqrt = jnp.where(deg > 0, jax.lax.rsqrt(deg), 0.0)
    return d_inv_sqrt[:, None] * a_hat * d_inv_sqrt[None, :]


def _round_up(v, m):
    return ((v + m - 1) // m) * m


def mpnn_encoder_forward(adj, x, params):
    B, N, nfeat = x.shape
    nhid = params["w1"].shape[1]
    nout = params["wf2"].shape[1]
    nout_pad = _round_up(nout, 128)                    # lane-dense output slab

    # ---- batch blocking: TB graphs per grid step (TB*N rows in MXU M dim) --
    TB = max(1, min(B, max(1, 256 // N)))
    while B % TB != 0:
        TB -= 1
    M = TB * N

    # ---- host-side prep (one-time, cheap XLA glue) --------------------------
    A = gcn_normalize(adj).astype(jnp.float32)
    # Block-diagonal adjacency: TB independent copies of the same graph.
    A_blk = jnp.kron(jnp.eye(TB, dtype=jnp.float32), A).astype(jnp.bfloat16)

    x_flat = x.reshape(B * N, nfeat).astype(jnp.bfloat16)

    # Fold eval-mode BatchNorm1d into per-channel scale / shift (f32).
    eps = 1e-5
    bn1_s = (params["bn1_gamma"] * jax.lax.rsqrt(params["bn1_var"] + eps))[None, :]
    bn1_t = (params["bn1_beta"] - params["bn1_mean"] * bn1_s[0])[None, :]
    bn2_s = (params["bn2_gamma"] * jax.lax.rsqrt(params["bn2_var"] + eps))[None, :]
    bn2_t = (params["bn2_beta"] - params["bn2_mean"] * bn2_s[0])[None, :]

    bf16 = lambda a: a.astype(jnp.bfloat16)
    w1 = bf16(params["w1"])
    w2 = bf16(params["w2"])
    # Split fc1 weight into [x | h1 | h2] row blocks -> no in-kernel concat.
    wf1 = params["wf1"]
    wf1_x = bf16(wf1[:nfeat])
    wf1_h1 = bf16(wf1[nfeat:nfeat + nhid])
    wf1_h2 = bf16(wf1[nfeat + nhid:])
    # Zero-pad fc2 to 128 output lanes for unmasked stores.
    wf2_pad = bf16(jnp.zeros((nhid, nout_pad), jnp.float32)
                   .at[:, :nout].set(params["wf2"]))
    bf2_pad = jnp.zeros((1, nout_pad), jnp.float32).at[:, :nout].set(params["bf2"])

    full2 = lambda i: (0, 0)          # whole-array (shared) blocks
    rowblk = lambda i: (i, 0)         # TB*N-row slab of the flattened batch

    out = pl.pallas_call(
        _mpnn_encoder_kernel,
        out_shape=jax.ShapeDtypeStruct((B * N, nout_pad), jnp.float32),
        grid=(B // TB,),
        in_specs=[
            pl.BlockSpec((M, M), full2),                  # block-diag norm adj
            pl.BlockSpec((M, nfeat), rowblk),             # x (flattened batch)
            pl.BlockSpec((nfeat, nhid), full2),           # W1
            pl.BlockSpec((1, nhid), full2),               # b1
            pl.BlockSpec((nhid, nhid), full2),            # W2
            pl.BlockSpec((1, nhid), full2),               # b2
            pl.BlockSpec((1, nhid), full2),               # bn1 scale
            pl.BlockSpec((1, nhid), full2),               # bn1 shift
            pl.BlockSpec((1, nhid), full2),               # bn2 scale
            pl.BlockSpec((1, nhid), full2),               # bn2 shift
            pl.BlockSpec((nfeat, nhid), full2),           # Wfc1 (x rows)
            pl.BlockSpec((nhid, nhid), full2),            # Wfc1 (h1 rows)
            pl.BlockSpec((nhid, nhid), full2),            # Wfc1 (h2 rows)
            pl.BlockSpec((1, nhid), full2),               # bfc1
            pl.BlockSpec((nhid, nout_pad), full2),        # Wfc2 (lane-padded)
            pl.BlockSpec((1, nout_pad), full2),           # bfc2 (lane-padded)
        ],
        out_specs=pl.BlockSpec((M, nout_pad), rowblk),
        compiler_params=pltpu.CompilerParams(
            dimension_semantics=("parallel",)),
        # NOTE: for large graphs (N ~ 2k+ on v7x's 64 MiB VMEM) the dense
        # (M, M) adjacency block would need to be streamed in panels instead
        # of held whole; at these shapes it is a few KiB.
    )(A_blk, x_flat,
      w1, params["b1"][None, :], w2, params["b2"][None, :],
      bn1_s, bn1_t, bn2_s, bn2_t,
      wf1_x, wf1_h1, wf1_h2, params["bf1"][None, :],
      wf2_pad, bf2_pad)

    return out[:, :nout].reshape(B, N, nout)


# ----------------------------------------------------------------------------
# Pure-JAX f32 reference (for numerical verification).
# ----------------------------------------------------------------------------
def mpnn_encoder_reference(adj, x, params):
    A = gcn_normalize(adj)
    eps = 1e-5

    def bn(h, g, b, m, v):
        return (h - m) / jnp.sqrt(v + eps) * g + b

    h1 = jax.nn.relu(jnp.einsum("ij,bjf->bif", A, x @ params["w1"]) + params["b1"])
    h1 = bn(h1, params["bn1_gamma"], params["bn1_beta"],
            params["bn1_mean"], params["bn1_var"])
    h2 = jax.nn.relu(jnp.einsum("ij,bjf->bif", A, h1 @ params["w2"]) + params["b2"])
    h2 = bn(h2, params["bn2_gamma"], params["bn2_beta"],
            params["bn2_mean"], params["bn2_var"])
    cat = jnp.concatenate([x, h1, h2], axis=2)
    z = jax.nn.relu(cat @ params["wf1"] + params["bf1"])
    z = jax.nn.relu(z @ params["wf2"] + params["bf2"])
    return z


# ----------------------------------------------------------------------------
def make_params(key, nfeat, nhid, nout):
    ks = jax.random.split(key, 12)
    return {
        "w1": 0.1 * jax.random.normal(ks[0], (nfeat, nhid), jnp.float32),
        "b1": 0.1 * jax.random.normal(ks[1], (nhid,), jnp.float32),
        "w2": 0.1 * jax.random.normal(ks[2], (nhid, nhid), jnp.float32),
        "b2": 0.1 * jax.random.normal(ks[3], (nhid,), jnp.float32),
        "wf1": 0.1 * jax.random.normal(ks[4], (nfeat + 2 * nhid, nhid), jnp.float32),
        "bf1": 0.1 * jax.random.normal(ks[5], (nhid,), jnp.float32),
        "wf2": 0.1 * jax.random.normal(ks[6], (nhid, nout), jnp.float32),
        "bf2": 0.1 * jax.random.normal(ks[7], (nout,), jnp.float32),
        # BatchNorm eval-mode parameters (deterministic, non-trivial).
        "bn1_gamma": 1.0 + 0.1 * jax.random.normal(ks[8], (nhid,), jnp.float32),
        "bn1_beta": 0.1 * jax.random.normal(ks[9], (nhid,), jnp.float32),
        "bn1_mean": 0.05 * jax.random.normal(ks[10], (nhid,), jnp.float32),
        "bn1_var": jnp.ones((nhid,), jnp.float32),
        "bn2_gamma": 1.0 + 0.1 * jax.random.normal(ks[11], (nhid,), jnp.float32),
        "bn2_beta": jnp.zeros((nhid,), jnp.float32),
        "bn2_mean": jnp.zeros((nhid,), jnp.float32),
        "bn2_var": jnp.ones((nhid,), jnp.float32),
    }


if __name__ == "__main__":
    B, N, NFEAT, NHID, NOUT = 2, 16, 8, 32, 16

    key = jax.random.PRNGKey(0)
    k_adj, k_x, k_p = jax.random.split(key, 3)

    # Random symmetric weighted adjacency with zero diagonal.
    a = jax.random.uniform(k_adj, (N, N), jnp.float32)
    a = (a + a.T) * 0.5
    a = a * (a > 0.5)                               # sparsify
    adj = a * (1.0 - jnp.eye(N, dtype=jnp.float32))

    x = jax.random.normal(k_x, (B, N, NFEAT), jnp.float32)
    params = make_params(k_p, NFEAT, NHID, NOUT)

    # TODO(synk): dropout is a no-op here (eval mode); training-mode dropout
    # RNG / BatchNorm batch statistics are not reproduced.
    out = mpnn_encoder_forward(adj, x, params)
    out = jax.block_until_ready(out)

    ref = mpnn_encoder_reference(adj, x, params)
    assert out.shape == (B, N, NOUT)
    # bf16 matmul inputs (f32 accumulation) -> loosen tolerance vs f32 reference.
    assert jnp.allclose(out, ref, atol=3e-2, rtol=3e-2), "mismatch vs reference"

    print("KERNEL_OK")
</pallas_src>

<mosaic_0001>
module attributes {stable_mosaic.version = 11 : i64} {
  func.func @_mpnn_encoder_kernel(%arg0: i32, %arg1: memref<32x32xbf16, #tpu.memory_space<vmem>>, %arg2: memref<32x8xbf16, #tpu.memory_space<vmem>>, %arg3: memref<8x32xbf16, #tpu.memory_space<vmem>>, %arg4: memref<1x32xf32, #tpu.memory_space<vmem>>, %arg5: memref<32x32xbf16, #tpu.memory_space<vmem>>, %arg6: memref<1x32xf32, #tpu.memory_space<vmem>>, %arg7: memref<1x32xf32, #tpu.memory_space<vmem>>, %arg8: memref<1x32xf32, #tpu.memory_space<vmem>>, %arg9: memref<1x32xf32, #tpu.memory_space<vmem>>, %arg10: memref<1x32xf32, #tpu.memory_space<vmem>>, %arg11: memref<8x32xbf16, #tpu.memory_space<vmem>>, %arg12: memref<32x32xbf16, #tpu.memory_space<vmem>>, %arg13: memref<32x32xbf16, #tpu.memory_space<vmem>>, %arg14: memref<1x32xf32, #tpu.memory_space<vmem>>, %arg15: memref<32x128xbf16, #tpu.memory_space<vmem>>, %arg16: memref<1x128xf32, #tpu.memory_space<vmem>>, %arg17: memref<32x128xf32, #tpu.memory_space<vmem>>) attributes {dimension_semantics = [#tpu.dimension_semantics<parallel>], iteration_bounds = array<i64: 1>, scalar_prefetch = 0 : i64, scratch_operands = 0 : i64, tpu.core_type = #tpu.core_type<tc>, window_params = [{pipeline_mode = #tpu.pipeline_mode<synchronous>, transform_indices = @transform_0, window_bounds = array<i64: 32, 32>}, {transform_indices = @transform_1, window_bounds = array<i64: 32, 8>}, {pipeline_mode = #tpu.pipeline_mode<synchronous>, transform_indices = @transform_2, window_bounds = array<i64: 8, 32>}, {pipeline_mode = #tpu.pipeline_mode<synchronous>, transform_indices = @transform_3, window_bounds = array<i64: 1, 32>}, {pipeline_mode = #tpu.pipeline_mode<synchronous>, transform_indices = @transform_4, window_bounds = array<i64: 32, 32>}, {pipeline_mode = #tpu.pipeline_mode<synchronous>, transform_indices = @transform_5, window_bounds = array<i64: 1, 32>}, {pipeline_mode = #tpu.pipeline_mode<synchronous>, transform_indices = @transform_6, window_bounds = array<i64: 1, 32>}, {pipeline_mode = #tpu.pipeline_mode<synchronous>, transform_indices = @transform_7, window_bounds = array<i64: 1, 32>}, {pipeline_mode = #tpu.pipeline_mode<synchronous>, transform_indices = @transform_8, window_bounds = array<i64: 1, 32>}, {pipeline_mode = #tpu.pipeline_mode<synchronous>, transform_indices = @transform_9, window_bounds = array<i64: 1, 32>}, {pipeline_mode = #tpu.pipeline_mode<synchronous>, transform_indices = @transform_10, window_bounds = array<i64: 8, 32>}, {pipeline_mode = #tpu.pipeline_mode<synchronous>, transform_indices = @transform_11, window_bounds = array<i64: 32, 32>}, {pipeline_mode = #tpu.pipeline_mode<synchronous>, transform_indices = @transform_12, window_bounds = array<i64: 32, 32>}, {pipeline_mode = #tpu.pipeline_mode<synchronous>, transform_indices = @transform_13, window_bounds = array<i64: 1, 32>}, {pipeline_mode = #tpu.pipeline_mode<synchronous>, transform_indices = @transform_14, window_bounds = array<i64: 32, 128>}, {pipeline_mode = #tpu.pipeline_mode<synchronous>, transform_indices = @transform_15, window_bounds = array<i64: 1, 128>}, {transform_indices = @transform_16, window_bounds = array<i64: 32, 128>}]} {
    %c0 = arith.constant 0 : index
    %c0_0 = arith.constant 0 : index
    %0 = vector.load %arg1[%c0, %c0_0] : memref<32x32xbf16, #tpu.memory_space<vmem>>, vector<32x32xbf16>
    %c0_1 = arith.constant 0 : index
    %c0_2 = arith.constant 0 : index
    %1 = vector.load %arg2[%c0_1, %c0_2] : memref<32x8xbf16, #tpu.memory_space<vmem>>, vector<32x8xbf16>
    %c0_3 = arith.constant 0 : index
    %c0_4 = arith.constant 0 : index
    %2 = vector.load %arg3[%c0_3, %c0_4] : memref<8x32xbf16, #tpu.memory_space<vmem>>, vector<8x32xbf16>
    %cst = arith.constant dense<0.000000e+00> : vector<32x32xf32>
    %3 = tpu.matmul %1, %2, %cst {dimension_numbers = #tpu.dot_dimension_numbers<[1], [0], [0], [1], [0, 0, 1, 1], [], []>} : vector<32x8xbf16>, vector<8x32xbf16>, vector<32x32xf32> -> vector<32x32xf32>
    %4 = arith.truncf %3 : vector<32x32xf32> to vector<32x32xbf16>
    %cst_5 = arith.constant dense<0.000000e+00> : vector<32x32xf32>
    %5 = tpu.matmul %0, %4, %cst_5 {dimension_numbers = #tpu.dot_dimension_numbers<[1], [0], [0], [1], [0, 0, 1, 1], [], []>} : vector<32x32xbf16>, vector<32x32xbf16>, vector<32x32xf32> -> vector<32x32xf32>
    %c0_6 = arith.constant 0 : index
    %c0_7 = arith.constant 0 : index
    %6 = vector.load %arg4[%c0_6, %c0_7] : memref<1x32xf32, #tpu.memory_space<vmem>>, vector<1x32xf32>
    %7 = vector.broadcast %6 : vector<1x32xf32> to vector<32x32xf32>
    %8 = arith.addf %5, %7 : vector<32x32xf32>
    %cst_8 = arith.constant 0.000000e+00 : f32
    %9 = vector.broadcast %cst_8 : f32 to vector<32x32xf32>
    %10 = arith.maximumf %8, %9 : vector<32x32xf32>
    %c0_9 = arith.constant 0 : index
    %c0_10 = arith.constant 0 : index
    %11 = vector.load %arg7[%c0_9, %c0_10] : memref<1x32xf32, #tpu.memory_space<vmem>>, vector<1x32xf32>
    %12 = vector.broadcast %11 : vector<1x32xf32> to vector<32x32xf32>
    %13 = arith.mulf %10, %12 : vector<32x32xf32>
    %c0_11 = arith.constant 0 : index
    %c0_12 = arith.constant 0 : index
    %14 = vector.load %arg8[%c0_11, %c0_12] : memref<1x32xf32, #tpu.memory_space<vmem>>, vector<1x32xf32>
    %15 = vector.broadcast %14 : vector<1x32xf32> to vector<32x32xf32>
    %16 = arith.addf %13, %15 : vector<32x32xf32>
    %17 = arith.truncf %16 : vector<32x32xf32> to vector<32x32xbf16>
    %c0_13 = arith.constant 0 : index
    %c0_14 = arith.constant 0 : index
    %18 = vector.load %arg5[%c0_13, %c0_14] : memref<32x32xbf16, #tpu.memory_space<vmem>>, vector<32x32xbf16>
    %cst_15 = arith.constant dense<0.000000e+00> : vector<32x32xf32>
    %19 = tpu.matmul %17, %18, %cst_15 {dimension_numbers = #tpu.dot_dimension_numbers<[1], [0], [0], [1], [0, 0, 1, 1], [], []>} : vector<32x32xbf16>, vector<32x32xbf16>, vector<32x32xf32> -> vector<32x32xf32>
    %20 = arith.truncf %19 : vector<32x32xf32> to vector<32x32xbf16>
    %cst_16 = arith.constant dense<0.000000e+00> : vector<32x32xf32>
    %21 = tpu.matmul %0, %20, %cst_16 {dimension_numbers = #tpu.dot_dimension_numbers<[1], [0], [0], [1], [0, 0, 1, 1], [], []>} : vector<32x32xbf16>, vector<32x32xbf16>, vector<32x32xf32> -> vector<32x32xf32>
    %c0_17 = arith.constant 0 : index
    %c0_18 = arith.constant 0 : index
    %22 = vector.load %arg6[%c0_17, %c0_18] : memref<1x32xf32, #tpu.memory_space<vmem>>, vector<1x32xf32>
    %23 = vector.broadcast %22 : vector<1x32xf32> to vector<32x32xf32>
    %24 = arith.addf %21, %23 : vector<32x32xf32>
    %cst_19 = arith.constant 0.000000e+00 : f32
    %25 = vector.broadcast %cst_19 : f32 to vector<32x32xf32>
    %26 = arith.maximumf %24, %25 : vector<32x32xf32>
    %c0_20 = arith.constant 0 : index
    %c0_21 = arith.constant 0 : index
    %27 = vector.load %arg9[%c0_20, %c0_21] : memref<1x32xf32, #tpu.memory_space<vmem>>, vector<1x32xf32>
    %28 = vector.broadcast %27 : vector<1x32xf32> to vector<32x32xf32>
    %29 = arith.mulf %26, %28 : vector<32x32xf32>
    %c0_22 = arith.constant 0 : index
    %c0_23 = arith.constant 0 : index
    %30 = vector.load %arg10[%c0_22, %c0_23] : memref<1x32xf32, #tpu.memory_space<vmem>>, vector<1x32xf32>
    %31 = vector.broadcast %30 : vector<1x32xf32> to vector<32x32xf32>
    %32 = arith.addf %29, %31 : vector<32x32xf32>
    %33 = arith.truncf %32 : vector<32x32xf32> to vector<32x32xbf16>
    %c0_24 = arith.constant 0 : index
    %c0_25 = arith.constant 0 : index
    %34 = vector.load %arg11[%c0_24, %c0_25] : memref<8x32xbf16, #tpu.memory_space<vmem>>, vector<8x32xbf16>
    %cst_26 = arith.constant dense<0.000000e+00> : vector<32x32xf32>
    %35 = tpu.matmul %1, %34, %cst_26 {dimension_numbers = #tpu.dot_dimension_numbers<[1], [0], [0], [1], [0, 0, 1, 1], [], []>} : vector<32x8xbf16>, vector<8x32xbf16>, vector<32x32xf32> -> vector<32x32xf32>
    %c0_27 = arith.constant 0 : index
    %c0_28 = arith.constant 0 : index
    %36 = vector.load %arg12[%c0_27, %c0_28] : memref<32x32xbf16, #tpu.memory_space<vmem>>, vector<32x32xbf16>
    %cst_29 = arith.constant dense<0.000000e+00> : vector<32x32xf32>
    %37 = tpu.matmul %17, %36, %cst_29 {dimension_numbers = #tpu.dot_dimension_numbers<[1], [0], [0], [1], [0, 0, 1, 1], [], []>} : vector<32x32xbf16>, vector<32x32xbf16>, vector<32x32xf32> -> vector<32x32xf32>
    %38 = arith.addf %35, %37 : vector<32x32xf32>
    %c0_30 = arith.constant 0 : index
    %c0_31 = arith.constant 0 : index
    %39 = vector.load %arg13[%c0_30, %c0_31] : memref<32x32xbf16, #tpu.memory_space<vmem>>, vector<32x32xbf16>
    %cst_32 = arith.constant dense<0.000000e+00> : vector<32x32xf32>
    %40 = tpu.matmul %33, %39, %cst_32 {dimension_numbers = #tpu.dot_dimension_numbers<[1], [0], [0], [1], [0, 0, 1, 1], [], []>} : vector<32x32xbf16>, vector<32x32xbf16>, vector<32x32xf32> -> vector<32x32xf32>
    %41 = arith.addf %38, %40 : vector<32x32xf32>
    %c0_33 = arith.constant 0 : index
    %c0_34 = arith.constant 0 : index
    %42 = vector.load %arg14[%c0_33, %c0_34] : memref<1x32xf32, #tpu.memory_space<vmem>>, vector<1x32xf32>
    %43 = vector.broadcast %42 : vector<1x32xf32> to vector<32x32xf32>
    %44 = arith.addf %41, %43 : vector<32x32xf32>
    %cst_35 = arith.constant 0.000000e+00 : f32
    %45 = vector.broadcast %cst_35 : f32 to vector<32x32xf32>
    %46 = arith.maximumf %44, %45 : vector<32x32xf32>
    %47 = arith.truncf %46 : vector<32x32xf32> to vector<32x32xbf16>
    %c0_36 = arith.constant 0 : index
    %c0_37 = arith.constant 0 : index
    %48 = vector.load %arg15[%c0_36, %c0_37] : memref<32x128xbf16, #tpu.memory_space<vmem>>, vector<32x128xbf16>
    %cst_38 = arith.constant dense<0.000000e+00> : vector<32x128xf32>
    %49 = tpu.matmul %47, %48, %cst_38 {dimension_numbers = #tpu.dot_dimension_numbers<[1], [0], [0], [1], [0, 0, 1, 1], [], []>} : vector<32x32xbf16>, vector<32x128xbf16>, vector<32x128xf32> -> vector<32x128xf32>
    %c0_39 = arith.constant 0 : index
    %c0_40 = arith.constant 0 : index
    %50 = vector.load %arg16[%c0_39, %c0_40] : memref<1x128xf32, #tpu.memory_space<vmem>>, vector<1x128xf32>
    %51 = vector.broadcast %50 : vector<1x128xf32> to vector<32x128xf32>
    %52 = arith.addf %49, %51 : vector<32x128xf32>
    %cst_41 = arith.constant 0.000000e+00 : f32
    %53 = vector.broadcast %cst_41 : f32 to vector<32x128xf32>
    %54 = arith.maximumf %52, %53 : vector<32x128xf32>
    %c0_42 = arith.constant 0 : index
    %c0_43 = arith.constant 0 : index
    %55 = vector.load %arg17[%c0_42, %c0_43] : memref<32x128xf32, #tpu.memory_space<vmem>>, vector<32x128xf32>
    tpu.vector_store %arg17[%c0_42, %c0_43], %54 {strides = array<i32>} : memref<32x128xf32, #tpu.memory_space<vmem>>, vector<32x128xf32>,
    return
  }
  func.func @transform_0(%arg0: i32) -> (i32, i32) {
    %c0_i32 = arith.constant 0 : i32
    %c0_i32_0 = arith.constant 0 : i32
    %c0_i32_1 = arith.constant 0 : i32
    return %c0_i32, %c0_i32_0 : i32, i32
  }
  func.func @transform_1(%arg0: i32) -> (i32, i32) {
    %c0_i32 = arith.constant 0 : i32
    %c0_i32_0 = arith.constant 0 : i32
    return %arg0, %c0_i32 : i32, i32
  }
  func.func @transform_2(%arg0: i32) -> (i32, i32) {
    %c0_i32 = arith.constant 0 : i32
    %c0_i32_0 = arith.constant 0 : i32
    %c0_i32_1 = arith.constant 0 : i32
    return %c0_i32, %c0_i32_0 : i32, i32
  }
  func.func @transform_3(%arg0: i32) -> (i32, i32) {
    %c0_i32 = arith.constant 0 : i32
    %c0_i32_0 = arith.constant 0 : i32
    %c0_i32_1 = arith.constant 0 : i32
    return %c0_i32, %c0_i32_0 : i32, i32
  }
  func.func @transform_4(%arg0: i32) -> (i32, i32) {
    %c0_i32 = arith.constant 0 : i32
    %c0_i32_0 = arith.constant 0 : i32
    %c0_i32_1 = arith.constant 0 : i32
    return %c0_i32, %c0_i32_0 : i32, i32
  }
  func.func @transform_5(%arg0: i32) -> (i32, i32) {
    %c0_i32 = arith.constant 0 : i32
    %c0_i32_0 = arith.constant 0 : i32
    %c0_i32_1 = arith.constant 0 : i32
    return %c0_i32, %c0_i32_0 : i32, i32
  }
  func.func @transform_6(%arg0: i32) -> (i32, i32) {
    %c0_i32 = arith.constant 0 : i32
    %c0_i32_0 = arith.constant 0 : i32
    %c0_i32_1 = arith.constant 0 : i32
    return %c0_i32, %c0_i32_0 : i32, i32
  }
  func.func @transform_7(%arg0: i32) -> (i32, i32) {
    %c0_i32 = arith.constant 0 : i32
    %c0_i32_0 = arith.constant 0 : i32
    %c0_i32_1 = arith.constant 0 : i32
    return %c0_i32, %c0_i32_0 : i32, i32
  }
  func.func @transform_8(%arg0: i32) -> (i32, i32) {
    %c0_i32 = arith.constant 0 : i32
    %c0_i32_0 = arith.constant 0 : i32
    %c0_i32_1 = arith.constant 0 : i32
    return %c0_i32, %c0_i32_0 : i32, i32
  }
  func.func @transform_9(%arg0: i32) -> (i32, i32) {
    %c0_i32 = arith.constant 0 : i32
    %c0_i32_0 = arith.constant 0 : i32
    %c0_i32_1 = arith.constant 0 : i32
    return %c0_i32, %c0_i32_0 : i32, i32
  }
  func.func @transform_10(%arg0: i32) -> (i32, i32) {
    %c0_i32 = arith.constant 0 : i32
    %c0_i32_0 = arith.constant 0 : i32
    %c0_i32_1 = arith.constant 0 : i32
    return %c0_i32, %c0_i32_0 : i32, i32
  }
  func.func @transform_11(%arg0: i32) -> (i32, i32) {
    %c0_i32 = arith.constant 0 : i32
    %c0_i32_0 = arith.constant 0 : i32
    %c0_i32_1 = arith.constant 0 : i32
    return %c0_i32, %c0_i32_0 : i32, i32
  }
  func.func @transform_12(%arg0: i32) -> (i32, i32) {
    %c0_i32 = arith.constant 0 : i32
    %c0_i32_0 = arith.constant 0 : i32
    %c0_i32_1 = arith.constant 0 : i32
    return %c0_i32, %c0_i32_0 : i32, i32
  }
  func.func @transform_13(%arg0: i32) -> (i32, i32) {
    %c0_i32 = arith.constant 0 : i32
    %c0_i32_0 = arith.constant 0 : i32
    %c0_i32_1 = arith.constant 0 : i32
    return %c0_i32, %c0_i32_0 : i32, i32
  }
  func.func @transform_14(%arg0: i32) -> (i32, i32) {
    %c0_i32 = arith.constant 0 : i32
    %c0_i32_0 = arith.constant 0 : i32
    %c0_i32_1 = arith.constant 0 : i32
    return %c0_i32, %c0_i32_0 : i32, i32
  }
  func.func @transform_15(%arg0: i32) -> (i32, i32) {
    %c0_i32 = arith.constant 0 : i32
    %c0_i32_0 = arith.constant 0 : i32
    %c0_i32_1 = arith.constant 0 : i32
    return %c0_i32, %c0_i32_0 : i32, i32
  }
  func.func @transform_16(%arg0: i32) -> (i32, i32) {
    %c0_i32 = arith.constant 0 : i32
    %c0_i32_0 = arith.constant 0 : i32
    return %arg0, %c0_i32 : i32, i32
  }
}

</mosaic_0001>

<llo_original>
// kernel: tpu_custom_call.1
$region0: #{tpu_custom_call.1}
  #allocation0 [shape = 'u32[]', space=smem, size = 0x4, offset = 0x4, fixed_abs, tag = 'smem constant byte address 0x4 - core index']
  #allocation1 [shape = 'u32[144,128]{1,0:T(1,128)}', space=vmem, size = 0x12000, scoped, tag = 'internal scratch']
  %s0 = inlined_call_operand.vmem [shape: bf16[32,32], index: 0, kind: input, shape index: {}]
  %s1 = inlined_call_operand.vmem [shape: bf16[32,8], index: 1, kind: input, shape index: {}]
  %s2 = inlined_call_operand.hbm [shape: bf16[8,32], index: 2, kind: input, shape index: {}]
  %s3 = inlined_call_operand.vmem [shape: f32[1,32], index: 3, kind: input, shape index: {}]
  %s4 = inlined_call_operand.vmem [shape: bf16[32,32], index: 4, kind: input, shape index: {}]
  %s5 = inlined_call_operand.hbm [shape: f32[1,32], index: 5, kind: input, shape index: {}]
  %s6 = inlined_call_operand.hbm [shape: f32[1,32], index: 6, kind: input, shape index: {}]
  %s7 = inlined_call_operand.hbm [shape: f32[1,32], index: 7, kind: input, shape index: {}]
  %s8 = inlined_call_operand.hbm [shape: f32[1,32], index: 8, kind: input, shape index: {}]
  %s9 = inlined_call_operand.hbm [shape: f32[1,32], index: 9, kind: input, shape index: {}]
  %s10 = inlined_call_operand.hbm [shape: bf16[8,32], index: 10, kind: input, shape index: {}]
  %s11 = inlined_call_operand.vmem [shape: bf16[32,32], index: 11, kind: input, shape index: {}]
  %s12 = inlined_call_operand.vmem [shape: bf16[32,32], index: 12, kind: input, shape index: {}]
  %s13 = inlined_call_operand.vmem [shape: f32[1,32], index: 13, kind: input, shape index: {}]
  %s14 = inlined_call_operand.hbm [shape: bf16[32,128], index: 14, kind: input, shape index: {}]
  %s15 = inlined_call_operand.vmem [shape: f32[1,128], index: 15, kind: input, shape index: {}]
  %s16 = inlined_call_operand.hbm [shape: f32[32,128], index: 16, kind: output, shape index: {}]
  %s17 = sld [smem:[#allocation0]]
  $region106: #{tpu_custom_call.1} parent=0
    _
  %s19 = ssub.s32 1, %s17
  %s20 = scalar_select 0, %s19, %s17
  $region1: #{tpu_custom_call.1} parent=0
    #allocation2 [shape = 'u8[2048]{0}', space=vmem, size = 0x800, scoped, tag = 'input window, operand 2, single buffered']
    #allocation3 [shape = 's32[1]{0}', space=sflag, size = 0x4, scoped, tag = 'scoped memory for tpu_custom_call.1']
    #allocation4 [shape = 's32[1]{0}', space=sflag, size = 0x4, scoped, tag = 'scoped memory for tpu_custom_call.1']
    #allocation5 [shape = 'u8[512]{0}', space=vmem, size = 0x400, scoped, tag = 'input window, operand 5, single buffered']
    #allocation6 [shape = 's32[1]{0}', space=sflag, size = 0x4, scoped, tag = 'scoped memory for tpu_custom_call.1']
    #allocation7 [shape = 'u8[512]{0}', space=vmem, size = 0x400, scoped, tag = 'input window, operand 6, single buffered']
    #allocation8 [shape = 'u8[512]{0}', space=vmem, size = 0x400, scoped, tag = 'input window, operand 7, single buffered']
    #allocation9 [shape = 's32[1]{0}', space=sflag, size = 0x4, scoped, tag = 'scoped memory for tpu_custom_call.1']
    #allocation10 [shape = 'u8[512]{0}', space=vmem, size = 0x400, scoped, tag = 'input window, operand 8, single buffered']
    #allocation11 [shape = 'u8[512]{0}', space=vmem, size = 0x400, scoped, tag = 'input window, operand 9, single buffered']
    #allocation12 [shape = 's32[1]{0}', space=sflag, size = 0x4, scoped, tag = 'scoped memory for tpu_custom_call.1']
    #allocation13 [shape = 'u8[2048]{0}', space=vmem, size = 0x800, scoped, tag = 'input window, operand 10, single buffered']
    #allocation14 [shape = 'u8[8192]{0}', space=vmem, size = 0x2000, scoped, tag = 'input window, operand 14, single buffered']
    #allocation15 [shape = 's32[1]{0}', space=sflag, size = 0x4, scoped, tag = 'scoped memory for tpu_custom_call.1']
    #allocation16 [shape = 'u8[16384]{0}', space=vmem, size = 0x4000, scoped, tag = 'output window, operand 0, single buffered']
    %21 = vsyncpa [#allocation3], 0
    %22 = vsyncpa [#allocation6], 0
    %23 = vsyncpa [#allocation9], 0
    %24 = vsyncpa [#allocation12], 0
    %25 = vsyncpa [#allocation15], 0
    %26 = vsyncpa [#allocation4], 0
    // Predicated region
    $region2: #{tpu_custom_call.1} parent=1 // pred_check
      _
    $region3: #{tpu_custom_call.1} parent=1 // pred_check_branch
      %28 = sbr.rel (0) target = $region5
    $region4: #{tpu_custom_call.1} parent=1 // pred_region
      _
    $region5: #{tpu_custom_call.1} parent=1 // pred_fallthru
      _
    // Predicated region
    $region6: #{tpu_custom_call.1} parent=1 // pred_check
      _
    $region7: #{tpu_custom_call.1} parent=1 // pred_check_branch
      %30 = sbr.rel (0) target = $region9
    $region8: #{tpu_custom_call.1} parent=1 // pred_region
      _
    $region9: #{tpu_custom_call.1} parent=1 // pred_fallthru
      _
    // Predicated region
    $region10: #{tpu_custom_call.1} parent=1 // pred_check
      _
    $region11: #{tpu_custom_call.1} parent=1 // pred_check_branch
      %32 = sbr.rel (0) target = $region13
    $region12: #{tpu_custom_call.1} parent=1 // pred_region
      %s34 = ssub.s32 64, 64
      %35 = vsyncadd [#allocation3], %s34
      %s37 = sshll.u32 [#allocation2], 4
      %s38 = int_to_ptr.vmem [resolvable:$true] %s37
      %40 = dma.hbm_to_vmem [thread:$0]  %s2, 64, %s38, [#allocation3]
    $region13: #{tpu_custom_call.1} parent=1 // pred_fallthru
      _
    // Predicated region
    $region14: #{tpu_custom_call.1} parent=1 // pred_check
      _
    $region15: #{tpu_custom_call.1} parent=1 // pred_check_branch
      %42 = sbr.rel (0) target = $region17
    $region16: #{tpu_custom_call.1} parent=1 // pred_region
      _
    $region17: #{tpu_custom_call.1} parent=1 // pred_fallthru
      _
    // Predicated region
    $region18: #{tpu_custom_call.1} parent=1 // pred_check
      _
    $region19: #{tpu_custom_call.1} parent=1 // pred_check_branch
      %44 = sbr.rel (0) target = $region21
    $region20: #{tpu_custom_call.1} parent=1 // pred_region
      _
    $region21: #{tpu_custom_call.1} parent=1 // pred_fallthru
      _
    // Predicated region
    $region22: #{tpu_custom_call.1} parent=1 // pred_check
      _
    $region23: #{tpu_custom_call.1} parent=1 // pred_check_branch
      %46 = sbr.rel (0) target = $region25
    $region24: #{tpu_custom_call.1} parent=1 // pred_region
      %s48 = ssub.s32 16, 16
      %49 = vsyncadd [#allocation6], %s48
      %s51 = sshll.u32 [#allocation5], 4
      %s52 = int_to_ptr.vmem [resolvable:$true] %s51
      %54 = dma.hbm_to_vmem [thread:$0]  %s5, 16, %s52, [#allocation6]
    $region25: #{tpu_custom_call.1} parent=1 // pred_fallthru
      _
    // Predicated region
    $region26: #{tpu_custom_call.1} parent=1 // pred_check
      _
    $region27: #{tpu_custom_call.1} parent=1 // pred_check_branch
      %56 = sbr.rel (0) target = $region29
    $region28: #{tpu_custom_call.1} parent=1 // pred_region
      %s58 = ssub.s32 16, 16
      %59 = vsyncadd [#allocation6], %s58
      %s61 = sshll.u32 [#allocation7], 4
      %s62 = int_to_ptr.vmem [resolvable:$true] %s61
      %64 = dma.hbm_to_vmem [thread:$0]  %s6, 16, %s62, [#allocation6]
    $region29: #{tpu_custom_call.1} parent=1 // pred_fallthru
      _
    // Predicated region
    $region30: #{tpu_custom_call.1} parent=1 // pred_check
      _
    $region31: #{tpu_custom_call.1} parent=1 // pred_check_branch
      %66 = sbr.rel (0) target = $region33
    $region32: #{tpu_custom_call.1} parent=1 // pred_region
      %s68 = ssub.s32 16, 16
      %69 = vsyncadd [#allocation9], %s68
      %s71 = sshll.u32 [#allocation8], 4
      %s72 = int_to_ptr.vmem [resolvable:$true] %s71
      %74 = dma.hbm_to_vmem [thread:$0]  %s7, 16, %s72, [#allocation9]
    $region33: #{tpu_custom_call.1} parent=1 // pred_fallthru
      _
    // Predicated region
    $region34: #{tpu_custom_call.1} parent=1 // pred_check
      _
    $region35: #{tpu_custom_call.1} parent=1 // pred_check_branch
      %76 = sbr.rel (0) target = $region37
    $region36: #{tpu_custom_call.1} parent=1 // pred_region
      %s78 = ssub.s32 16, 16
      %79 = vsyncadd [#allocation9], %s78
      %s81 = sshll.u32 [#allocation10], 4
      %s82 = int_to_ptr.vmem [resolvable:$true] %s81
      %84 = dma.hbm_to_vmem [thread:$0]  %s8, 16, %s82, [#allocation9]
    $region37: #{tpu_custom_call.1} parent=1 // pred_fallthru
      _
    // Predicated region
    $region38: #{tpu_custom_call.1} parent=1 // pred_check
      _
    $region39: #{tpu_custom_call.1} parent=1 // pred_check_branch
      %86 = sbr.rel (0) target = $region41
    $region40: #{tpu_custom_call.1} parent=1 // pred_region
      %s88 = ssub.s32 16, 16
      %89 = vsyncadd [#allocation12], %s88
      %s91 = sshll.u32 [#allocation11], 4
      %s92 = int_to_ptr.vmem [resolvable:$true] %s91
      %94 = dma.hbm_to_vmem [thread:$0]  %s9, 16, %s92, [#allocation12]
    $region41: #{tpu_custom_call.1} parent=1 // pred_fallthru
      _
    // Predicated region
    $region42: #{tpu_custom_call.1} parent=1 // pred_check
      _
    $region43: #{tpu_custom_call.1} parent=1 // pred_check_branch
      %96 = sbr.rel (0) target = $region45
    $region44: #{tpu_custom_call.1} parent=1 // pred_region
      %s98 = ssub.s32 64, 64
      %99 = vsyncadd [#allocation12], %s98
      %s101 = sshll.u32 [#allocation13], 4
      %s102 = int_to_ptr.vmem [resolvable:$true] %s101
      %104 = dma.hbm_to_vmem [thread:$0]  %s10, 64, %s102, [#allocation12]
    $region45: #{tpu_custom_call.1} parent=1 // pred_fallthru
      _
    // Predicated region
    $region46: #{tpu_custom_call.1} parent=1 // pred_check
      _
    $region47: #{tpu_custom_call.1} parent=1 // pred_check_branch
      %106 = sbr.rel (0) target = $region49
    $region48: #{tpu_custom_call.1} parent=1 // pred_region
      _
    $region49: #{tpu_custom_call.1} parent=1 // pred_fallthru
      _
    // Predicated region
    $region50: #{tpu_custom_call.1} parent=1 // pred_check
      _
    $region51: #{tpu_custom_call.1} parent=1 // pred_check_branch
      %108 = sbr.rel (0) target = $region53
    $region52: #{tpu_custom_call.1} parent=1 // pred_region
      _
    $region53: #{tpu_custom_call.1} parent=1 // pred_fallthru
      _
    // Predicated region
    $region54: #{tpu_custom_call.1} parent=1 // pred_check
      _
    $region55: #{tpu_custom_call.1} parent=1 // pred_check_branch
      %110 = sbr.rel (0) target = $region57
    $region56: #{tpu_custom_call.1} parent=1 // pred_region
      _
    $region57: #{tpu_custom_call.1} parent=1 // pred_fallthru
      _
    // Predicated region
    $region58: #{tpu_custom_call.1} parent=1 // pred_check
      _
    $region59: #{tpu_custom_call.1} parent=1 // pred_check_branch
      %112 = sbr.rel (0) target = $region61
    $region60: #{tpu_custom_call.1} parent=1 // pred_region
      %s114 = ssub.s32 256, 256
      %115 = vsyncadd [#allocation15], %s114
      %s116 = sshll.u32 [#allocation14], 4
      %s117 = int_to_ptr.vmem [resolvable:$true] %s116
      %122 = dma.hbm_to_vmem [thread:$0]  %s14, 256, %s117, [#allocation15], 64, 64, 4
    $region61: #{tpu_custom_call.1} parent=1 // pred_fallthru
      _
    // Predicated region
    $region62: #{tpu_custom_call.1} parent=1 // pred_check
      _
    $region63: #{tpu_custom_call.1} parent=1 // pred_check_branch
      %124 = sbr.rel (0) target = $region65
    $region64: #{tpu_custom_call.1} parent=1 // pred_region
      _
    $region65: #{tpu_custom_call.1} parent=1 // pred_fallthru
      _
    // Predicated region
    $region66: #{tpu_custom_call.1} parent=1 // pred_check
      _
    $region67: #{tpu_custom_call.1} parent=1 // pred_check_branch
      %126 = sbr.rel (0) target = $region69
    $region68: #{tpu_custom_call.1} parent=1 // pred_region
      %127 = dma.done [#allocation3], 64
    $region69: #{tpu_custom_call.1} parent=1 // pred_fallthru
      _
    // Predicated region
    $region70: #{tpu_custom_call.1} parent=1 // pred_check
      _
    $region71: #{tpu_custom_call.1} parent=1 // pred_check_branch
      %129 = sbr.rel (0) target = $region73
    $region72: #{tpu_custom_call.1} parent=1 // pred_region
      %130 = dma.done [#allocation6], 16
    $region73: #{tpu_custom_call.1} parent=1 // pred_fallthru
      _
    // Predicated region
    $region74: #{tpu_custom_call.1} parent=1 // pred_check
      _
    $region75: #{tpu_custom_call.1} parent=1 // pred_check_branch
      %132 = sbr.rel (0) target = $region77
    $region76: #{tpu_custom_call.1} parent=1 // pred_region
      %133 = dma.done [#allocation6], 16
    $region77: #{tpu_custom_call.1} parent=1 // pred_fallthru
      _
    // Predicated region
    $region78: #{tpu_custom_call.1} parent=1 // pred_check
      _
    $region79: #{tpu_custom_call.1} parent=1 // pred_check_branch
      %135 = sbr.rel (0) target = $region81
    $region80: #{tpu_custom_call.1} parent=1 // pred_region
      %136 = dma.done [#allocation9], 16
    $region81: #{tpu_custom_call.1} parent=1 // pred_fallthru
      _
    // Predicated region
    $region82: #{tpu_custom_call.1} parent=1 // pred_check
      _
    $region83: #{tpu_custom_call.1} parent=1 // pred_check_branch
      %138 = sbr.rel (0) target = $region85
    $region84: #{tpu_custom_call.1} parent=1 // pred_region
      %139 = dma.done [#allocation9], 16
    $region85: #{tpu_custom_call.1} parent=1 // pred_fallthru
      _
    // Predicated region
    $region86: #{tpu_custom_call.1} parent=1 // pred_check
      _
    $region87: #{tpu_custom_call.1} parent=1 // pred_check_branch
      %141 = sbr.rel (0) target = $region89
    $region88: #{tpu_custom_call.1} parent=1 // pred_region
      %142 = dma.done [#allocation12], 16
    $region89: #{tpu_custom_call.1} parent=1 // pred_fallthru
      _
    // Predicated region
    $region90: #{tpu_custom_call.1} parent=1 // pred_check
      _
    $region91: #{tpu_custom_call.1} parent=1 // pred_check_branch
      %144 = sbr.rel (0) target = $region93
    $region92: #{tpu_custom_call.1} parent=1 // pred_region
      %145 = dma.done [#allocation12], 64
    $region93: #{tpu_custom_call.1} parent=1 // pred_fallthru
      _
    // Predicated region
    $region94: #{tpu_custom_call.1} parent=1 // pred_check
      _
    $region95: #{tpu_custom_call.1} parent=1 // pred_check_branch
      %147 = sbr.rel (0) target = $region97
    $region96: #{tpu_custom_call.1} parent=1 // pred_region
      %148 = dma.done [#allocation15], 256
    $region97: #{tpu_custom_call.1} parent=1 // pred_fallthru
      _
    %v150 = vld [vmem:[%s0] sm:$0xf]
    %v151 = vld [vmem:[%s0 + $0x4] sm:$0xf]
    %v152 = vld [vmem:[%s0 + $0x8] sm:$0xf]
    %v153 = vld [vmem:[%s0 + $0xc] sm:$0xf]
    %v154 = vld [vmem:[%s1] sm:$0xf]
    %v155 = vld [vmem:[%s1 + $0x4] sm:$0xf]
    %v156 = vld [vmem:[%s1 + $0x8] sm:$0xf]
    %v157 = vld [vmem:[%s1 + $0xc] sm:$0xf]
    %v158 = vld [vmem:[#allocation2] sm:$0xf]
    %v163 = vunpack.c.l.b16 %v154
    %v164 = vunpack.c.l.b16 %v155
    %v165 = vunpack.c.l.b16 %v156
    %v166 = vunpack.c.l.b16 %v157
    %v167 = vpack.c.b16 %v164, %v163
    %v168 = vpack.c.b16 %v166, %v165
    %vm169 = vcmask 64512
    %v171 = vsel %vm169, %v167, 0
    %v174 = vsel %vm169, %v168, 0
    %vm176 = vcmask 1043456
    %v178 = vsel %vm176, %v158, 0
    %180 = vmatprep.subr.bf16.mxu0 0
    %181 = vmatpush1.bf16.msra.mxu0 %v178
    %182 = vmatprep.subr.bf16.mxu0 0
    %183 = vmatpush1.bf16.msra.mxu0 0
    %184 = vmatprep.subr.bf16.mxu0 0
    %185 = vmatpush1.bf16.msra.mxu0 0
    %186 = vmatprep.subr.bf16.mxu0 0
    %187 = vmatpush1.bf16.msra.mxu0 0
    %188 = vmatprep.subr.bf16.mxu0 0
    %189 = vmatpush1.bf16.msra.mxu0 0
    %190 = vmatprep.subr.bf16.mxu0 0
    %191 = vmatpush1.bf16.msra.mxu0 0
    %192 = vmatprep.subr.bf16.mxu0 0
    %193 = vmatpush1.bf16.msra.mxu0 0
    %194 = vmatprep.subr.bf16.mxu0 0
    %195 = vmatpush1.bf16.msra.mxu0 0
    %196 = vmatprep.subr.bf16.mxu0 0
    %197 = vmatpush1.bf16.msra.mxu0 0
    %198 = vmatprep.subr.bf16.mxu0 0
    %199 = vmatpush1.bf16.msra.mxu0 0
    %200 = vmatprep.subr.bf16.mxu0 0
    %201 = vmatpush1.bf16.msra.mxu0 0
    %202 = vmatprep.subr.bf16.mxu0 0
    %203 = vmatpush1.bf16.msra.mxu0 0
    %204 = vmatprep.subr.bf16.mxu0 0
    %205 = vmatpush1.bf16.msra.mxu0 0
    %206 = vmatprep.subr.bf16.mxu0 0
    %207 = vmatpush1.bf16.msra.mxu0 0
    %208 = vmatprep.subr.bf16.mxu0 0
    %209 = vmatpush1.bf16.msra.mxu0 0
    %210 = vmatprep.subr.bf16.mxu0 0
    %211 = vmatpush1.bf16.msra.mxu0 0
    %212 = vmatprep.mubr.bf16.mxu0 0
    %213 = vmatmul.mubr.bf16.gmra.mrb[0].mxu0 %v171
    %v214 = vpop.f32.mrb[0].mxu0
    %v215 = vadd.f32 0.0, %v214
    %v216 = vpop.f32.mrb[0].mxu0
    %v217 = vpop.f32.mrb[0].mxu0
    %v218 = vadd.f32 0.0, %v217
    %v219 = vpop.f32.mrb[0].mxu0
    %220 = vmatprep.mubr.bf16.mxu0 0
    %221 = vmatmul.mubr.bf16.gmra.mrb[0].mxu0 %v174
    %v222 = vpop.f32.mrb[0].mxu0
    %v223 = vadd.f32 0.0, %v222
    %v224 = vpop.f32.mrb[0].mxu0
    %v225 = vpop.f32.mrb[0].mxu0
    %v226 = vadd.f32 0.0, %v225
    %v227 = vpop.f32.mrb[0].mxu0
    %228 = vdwg.mxu0
    %v229 = vpack.c.bf16 %v218, %v215
    %v230 = vpack.c.bf16 %v226, %v223
    %v231 = vld [vmem:[%s3] sm:$0x1]
    %v233 = vlaneseq
    %v234 = vshrl.u32 %v233, 7
    %v235 = vsub.s32 0, %v234
    %v236 = vrot.slane %v231, %v235
    %v242 = vunpack.c.l.b16 %v150
    %v243 = vunpack.c.l.b16 %v151
    %v244 = vunpack.c.l.b16 %v152
    %v245 = vunpack.c.l.b16 %v153
    %v246 = vpack.c.b16 %v243, %v242
    %v247 = vpack.c.b16 %v245, %v244
    %vm248 = vcmask 261120
    %v250 = vsel %vm248, %v246, 0
    %v253 = vsel %vm248, %v247, 0
    %255 = vmatprep.subr.bf16.mxu0 0
    %256 = vmatpush1.bf16.msra.mxu0 %v229
    %257 = vmatprep.subr.bf16.mxu0 0
    %258 = vmatpush1.bf16.msra.mxu0 %v230
    %259 = vmatprep.subr.bf16.mxu0 0
    %260 = vmatpush1.bf16.msra.mxu0 0
    %261 = vmatprep.subr.bf16.mxu0 0
    %262 = vmatpush1.bf16.msra.mxu0 0
    %263 = vmatprep.subr.bf16.mxu0 0
    %264 = vmatpush1.bf16.msra.mxu0 0
    %265 = vmatprep.subr.bf16.mxu0 0
    %266 = vmatpush1.bf16.msra.mxu0 0
    %267 = vmatprep.subr.bf16.mxu0 0
    %268 = vmatpush1.bf16.msra.mxu0 0
    %269 = vmatprep.subr.bf16.mxu0 0
    %270 = vmatpush1.bf16.msra.mxu0 0
    %271 = vmatprep.subr.bf16.mxu0 0
    %272 = vmatpush1.bf16.msra.mxu0 0
    %273 = vmatprep.subr.bf16.mxu0 0
    %274 = vmatpush1.bf16.msra.mxu0 0
    %275 = vmatprep.subr.bf16.mxu0 0
    %276 = vmatpush1.bf16.msra.mxu0 0
    %277 = vmatprep.subr.bf16.mxu0 0
    %278 = vmatpush1.bf16.msra.mxu0 0
    %279 = vmatprep.subr.bf16.mxu0 0
    %280 = vmatpush1.bf16.msra.mxu0 0
    %281 = vmatprep.subr.bf16.mxu0 0
    %282 = vmatpush1.bf16.msra.mxu0 0
    %283 = vmatprep.subr.bf16.mxu0 0
    %284 = vmatpush1.bf16.msra.mxu0 0
    %285 = vmatprep.subr.bf16.mxu0 0
    %286 = vmatpush1.bf16.msra.mxu0 0
    %287 = vmatprep.mubr.bf16.mxu0 0
    %288 = vmatmul.mubr.bf16.gmra.mrb[0].mxu0 %v250
    %v289 = vpop.f32.mrb[0].mxu0
    %v290 = vadd.f32 %v236, %v289
    %v291 = vpop.f32.mrb[0].mxu0
    %v292 = vpop.f32.mrb[0].mxu0
    %v293 = vadd.f32 %v236, %v292
    %v294 = vpop.f32.mrb[0].mxu0
    %295 = vmatprep.mubr.bf16.mxu0 0
    %296 = vmatmul.mubr.bf16.gmra.mrb[0].mxu0 %v253
    %v297 = vpop.f32.mrb[0].mxu0
    %v298 = vadd.f32 %v236, %v297
    %v299 = vpop.f32.mrb[0].mxu0
    %v300 = vpop.f32.mrb[0].mxu0
    %v301 = vadd.f32 %v236, %v300
    %v302 = vpop.f32.mrb[0].mxu0
    %303 = vdwg.mxu0
    %v304 = vmax.f32 %v290, 0.0
    %v305 = vmax.f32 %v293, 0.0
    %v306 = vmax.f32 %v298, 0.0
    %v307 = vmax.f32 %v301, 0.0
    %v308 = vld [vmem:[#allocation7] sm:$0x1]
    %v310 = vlaneseq
    %v311 = vshrl.u32 %v310, 7
    %v312 = vsub.s32 0, %v311
    %v313 = vrot.slane %v308, %v312
    %v315 = vmul.f32 %v304, %v313
    %v316 = vmul.f32 %v305, %v313
    %v317 = vmul.f32 %v306, %v313
    %v318 = vmul.f32 %v307, %v313
    %v319 = vld [vmem:[#allocation8] sm:$0x1]
    %v321 = vlaneseq
    %v322 = vshrl.u32 %v321, 7
    %v323 = vsub.s32 0, %v322
    %v324 = vrot.slane %v319, %v323
    %v326 = vadd.f32 %v315, %v324
    %v327 = vadd.f32 %v316, %v324
    %v328 = vadd.f32 %v317, %v324
    %v329 = vadd.f32 %v318, %v324
    %v330 = vpack.c.bf16 %v327, %v326
    %v331 = vpack.c.bf16 %v329, %v328
    %v332 = vld [vmem:[%s4] sm:$0xf]
    %v333 = vld [vmem:[%s4 + $0x4] sm:$0xf]
    %v334 = vld [vmem:[%s4 + $0x8] sm:$0xf]
    %v335 = vld [vmem:[%s4 + $0xc] sm:$0xf]
    %v340 = vunpack.c.l.b16 %v332
    %v341 = vunpack.c.l.b16 %v333
    %v342 = vunpack.c.l.b16 %v334
    %v343 = vunpack.c.l.b16 %v335
    %v344 = vpack.c.b16 %v341, %v340
    %v345 = vpack.c.b16 %v343, %v342
    %v349 = vsel %vm248, %v330, 0
    %v352 = vsel %vm248, %v331, 0
    %354 = vmatprep.subr.bf16.mxu0 0
    %355 = vmatpush1.bf16.msra.mxu0 %v344
    %356 = vmatprep.subr.bf16.mxu0 0
    %357 = vmatpush1.bf16.msra.mxu0 %v345
    %358 = vmatprep.subr.bf16.mxu0 0
    %359 = vmatpush1.bf16.msra.mxu0 0
    %360 = vmatprep.subr.bf16.mxu0 0
    %361 = vmatpush1.bf16.msra.mxu0 0
    %362 = vmatprep.subr.bf16.mxu0 0
    %363 = vmatpush1.bf16.msra.mxu0 0
    %364 = vmatprep.subr.bf16.mxu0 0
    %365 = vmatpush1.bf16.msra.mxu0 0
    %366 = vmatprep.subr.bf16.mxu0 0
    %367 = vmatpush1.bf16.msra.mxu0 0
    %368 = vmatprep.subr.bf16.mxu0 0
    %369 = vmatpush1.bf16.msra.mxu0 0
    %370 = vmatprep.subr.bf16.mxu0 0
    %371 = vmatpush1.bf16.msra.mxu0 0
    %372 = vmatprep.subr.bf16.mxu0 0
    %373 = vmatpush1.bf16.msra.mxu0 0
    %374 = vmatprep.subr.bf16.mxu0 0
    %375 = vmatpush1.bf16.msra.mxu0 0
    %376 = vmatprep.subr.bf16.mxu0 0
    %377 = vmatpush1.bf16.msra.mxu0 0
    %378 = vmatprep.subr.bf16.mxu0 0
    %379 = vmatpush1.bf16.msra.mxu0 0
    %380 = vmatprep.subr.bf16.mxu0 0
    %381 = vmatpush1.bf16.msra.mxu0 0
    %382 = vmatprep.subr.bf16.mxu0 0
    %383 = vmatpush1.bf16.msra.mxu0 0
    %384 = vmatprep.subr.bf16.mxu0 0
    %385 = vmatpush1.bf16.msra.mxu0 0
    %386 = vmatprep.mubr.bf16.mxu0 0
    %387 = vmatmul.mubr.bf16.gmra.mrb[0].mxu0 %v349
    %v388 = vpop.f32.mrb[0].mxu0
    %v389 = vadd.f32 0.0, %v388
    %v390 = vpop.f32.mrb[0].mxu0
    %v391 = vpop.f32.mrb[0].mxu0
    %v392 = vadd.f32 0.0, %v391
    %v393 = vpop.f32.mrb[0].mxu0
    %394 = vmatprep.mubr.bf16.mxu0 0
    %395 = vmatmul.mubr.bf16.gmra.mrb[0].mxu0 %v352
    %v396 = vpop.f32.mrb[0].mxu0
    %v397 = vadd.f32 0.0, %v396
    %v398 = vpop.f32.mrb[0].mxu0
    %v399 = vpop.f32.mrb[0].mxu0
    %v400 = vadd.f32 0.0, %v399
    %v401 = vpop.f32.mrb[0].mxu0
    %402 = vdwg.mxu0
    %v403 = vpack.c.bf16 %v392, %v389
    %v404 = vpack.c.bf16 %v400, %v397
    %v405 = vld [vmem:[#allocation5] sm:$0x1]
    %v407 = vlaneseq
    %v408 = vshrl.u32 %v407, 7
    %v409 = vsub.s32 0, %v408
    %v410 = vrot.slane %v405, %v409
    %412 = vmatprep.subr.bf16.mxu0 0
    %413 = vmatpush1.bf16.msra.mxu0 %v403
    %414 = vmatprep.subr.bf16.mxu0 0
    %415 = vmatpush1.bf16.msra.mxu0 %v404
    %416 = vmatprep.subr.bf16.mxu0 0
    %417 = vmatpush1.bf16.msra.mxu0 0
    %418 = vmatprep.subr.bf16.mxu0 0
    %419 = vmatpush1.bf16.msra.mxu0 0
    %420 = vmatprep.subr.bf16.mxu0 0
    %421 = vmatpush1.bf16.msra.mxu0 0
    %422 = vmatprep.subr.bf16.mxu0 0
    %423 = vmatpush1.bf16.msra.mxu0 0
    %424 = vmatprep.subr.bf16.mxu0 0
    %425 = vmatpush1.bf16.msra.mxu0 0
    %426 = vmatprep.subr.bf16.mxu0 0
    %427 = vmatpush1.bf16.msra.mxu0 0
    %428 = vmatprep.subr.bf16.mxu0 0
    %429 = vmatpush1.bf16.msra.mxu0 0
    %430 = vmatprep.subr.bf16.mxu0 0
    %431 = vmatpush1.bf16.msra.mxu0 0
    %432 = vmatprep.subr.bf16.mxu0 0
    %433 = vmatpush1.bf16.msra.mxu0 0
    %434 = vmatprep.subr.bf16.mxu0 0
    %435 = vmatpush1.bf16.msra.mxu0 0
    %436 = vmatprep.subr.bf16.mxu0 0
    %437 = vmatpush1.bf16.msra.mxu0 0
    %438 = vmatprep.subr.bf16.mxu0 0
    %439 = vmatpush1.bf16.msra.mxu0 0
    %440 = vmatprep.subr.bf16.mxu0 0
    %441 = vmatpush1.bf16.msra.mxu0 0
    %442 = vmatprep.subr.bf16.mxu0 0
    %443 = vmatpush1.bf16.msra.mxu0 0
    %444 = vmatprep.mubr.bf16.mxu0 0
    %445 = vmatmul.mubr.bf16.gmra.mrb[0].mxu0 %v250
    %v446 = vpop.f32.mrb[0].mxu0
    %v447 = vadd.f32 %v410, %v446
    %v448 = vpop.f32.mrb[0].mxu0
    %v449 = vpop.f32.mrb[0].mxu0
    %v450 = vadd.f32 %v410, %v449
    %v451 = vpop.f32.mrb[0].mxu0
    %452 = vmatprep.mubr.bf16.mxu0 0
    %453 = vmatmul.mubr.bf16.gmra.mrb[0].mxu0 %v253
    %v454 = vpop.f32.mrb[0].mxu0
    %v455 = vadd.f32 %v410, %v454
    %v456 = vpop.f32.mrb[0].mxu0
    %v457 = vpop.f32.mrb[0].mxu0
    %v458 = vadd.f32 %v410, %v457
    %v459 = vpop.f32.mrb[0].mxu0
    %460 = vdwg.mxu0
    %v461 = vmax.f32 %v447, 0.0
    %v462 = vmax.f32 %v450, 0.0
    %v463 = vmax.f32 %v455, 0.0
    %v464 = vmax.f32 %v458, 0.0
    %v465 = vld [vmem:[#allocation10] sm:$0x1]
    %v467 = vlaneseq
    %v468 = vshrl.u32 %v467, 7
    %v469 = vsub.s32 0, %v468
    %v470 = vrot.slane %v465, %v469
    %v472 = vmul.f32 %v461, %v470
    %v473 = vmul.f32 %v462, %v470
    %v474 = vmul.f32 %v463, %v470
    %v475 = vmul.f32 %v464, %v470
    %v476 = vld [vmem:[#allocation11] sm:$0x1]
    %v478 = vlaneseq
    %v479 = vshrl.u32 %v478, 7
    %v480 = vsub.s32 0, %v479
    %v481 = vrot.slane %v476, %v480
    %v483 = vadd.f32 %v472, %v481
    %v484 = vadd.f32 %v473, %v481
    %v485 = vadd.f32 %v474, %v481
    %v486 = vadd.f32 %v475, %v481
    %v487 = vpack.c.bf16 %v484, %v483
    %v488 = vpack.c.bf16 %v486, %v485
    %v489 = vld [vmem:[#allocation13] sm:$0xf]
    %v490 = vld [vmem:[%s11] sm:$0xf]
    %v491 = vld [vmem:[%s11 + $0x4] sm:$0xf]
    %v492 = vld [vmem:[%s11 + $0x8] sm:$0xf]
    %v493 = vld [vmem:[%s11 + $0xc] sm:$0xf]
    %v498 = vunpack.c.l.b16 %v490
    %v499 = vunpack.c.l.b16 %v491
    %v500 = vunpack.c.l.b16 %v492
    %v501 = vunpack.c.l.b16 %v493
    %v502 = vpack.c.b16 %v499, %v498
    %v503 = vpack.c.b16 %v501, %v500
    %506 = vmatprep.subr.bf16.mxu0 0
    %507 = vmatpush1.bf16.msra.mxu0 %v502
    %508 = vmatprep.subr.bf16.mxu0 0
    %509 = vmatpush1.bf16.msra.mxu0 %v503
    %510 = vmatprep.subr.bf16.mxu0 0
    %511 = vmatpush1.bf16.msra.mxu0 0
    %512 = vmatprep.subr.bf16.mxu0 0
    %513 = vmatpush1.bf16.msra.mxu0 0
    %514 = vmatprep.subr.bf16.mxu0 0
    %515 = vmatpush1.bf16.msra.mxu0 0
    %516 = vmatprep.subr.bf16.mxu0 0
    %517 = vmatpush1.bf16.msra.mxu0 0
    %518 = vmatprep.subr.bf16.mxu0 0
    %519 = vmatpush1.bf16.msra.mxu0 0
    %520 = vmatprep.subr.bf16.mxu0 0
    %521 = vmatpush1.bf16.msra.mxu0 0
    %522 = vmatprep.subr.bf16.mxu0 0
    %523 = vmatpush1.bf16.msra.mxu0 0
    %524 = vmatprep.subr.bf16.mxu0 0
    %525 = vmatpush1.bf16.msra.mxu0 0
    %526 = vmatprep.subr.bf16.mxu0 0
    %527 = vmatpush1.bf16.msra.mxu0 0
    %528 = vmatprep.subr.bf16.mxu0 0
    %529 = vmatpush1.bf16.msra.mxu0 0
    %530 = vmatprep.subr.bf16.mxu0 0
    %531 = vmatpush1.bf16.msra.mxu0 0
    %532 = vmatprep.subr.bf16.mxu0 0
    %533 = vmatpush1.bf16.msra.mxu0 0
    %534 = vmatprep.subr.bf16.mxu0 0
    %535 = vmatpush1.bf16.msra.mxu0 0
    %536 = vmatprep.subr.bf16.mxu0 0
    %537 = vmatpush1.bf16.msra.mxu0 0
    %538 = vmatprep.mubr.bf16.mxu0 0
    %539 = vmatmul.mubr.bf16.gmra.mrb[0].mxu0 %v349
    %v540 = vpop.f32.mrb[0].mxu0
    %v541 = vadd.f32 0.0, %v540
    %v542 = vpop.f32.mrb[0].mxu0
    %v543 = vpop.f32.mrb[0].mxu0
    %v544 = vadd.f32 0.0, %v543
    %v545 = vpop.f32.mrb[0].mxu0
    %546 = vmatprep.mubr.bf16.mxu0 0
    %547 = vmatmul.mubr.bf16.gmra.mrb[0].mxu0 %v352
    %v548 = vpop.f32.mrb[0].mxu0
    %v549 = vadd.f32 0.0, %v548
    %v550 = vpop.f32.mrb[0].mxu0
    %v551 = vpop.f32.mrb[0].mxu0
    %v552 = vadd.f32 0.0, %v551
    %v553 = vpop.f32.mrb[0].mxu0
    %554 = vdwg.mxu0
    %v556 = vsel %vm176, %v489, 0
    %558 = vmatprep.subr.bf16.mxu0 0
    %559 = vmatpush1.bf16.msra.mxu0 %v556
    %560 = vmatprep.subr.bf16.mxu0 0
    %561 = vmatpush1.bf16.msra.mxu0 0
    %562 = vmatprep.subr.bf16.mxu0 0
    %563 = vmatpush1.bf16.msra.mxu0 0
    %564 = vmatprep.subr.bf16.mxu0 0
    %565 = vmatpush1.bf16.msra.mxu0 0
    %566 = vmatprep.subr.bf16.mxu0 0
    %567 = vmatpush1.bf16.msra.mxu0 0
    %568 = vmatprep.subr.bf16.mxu0 0
    %569 = vmatpush1.bf16.msra.mxu0 0
    %570 = vmatprep.subr.bf16.mxu0 0
    %571 = vmatpush1.bf16.msra.mxu0 0
    %572 = vmatprep.subr.bf16.mxu0 0
    %573 = vmatpush1.bf16.msra.mxu0 0
    %574 = vmatprep.subr.bf16.mxu0 0
    %575 = vmatpush1.bf16.msra.mxu0 0
    %576 = vmatprep.subr.bf16.mxu0 0
    %577 = vmatpush1.bf16.msra.mxu0 0
    %578 = vmatprep.subr.bf16.mxu0 0
    %579 = vmatpush1.bf16.msra.mxu0 0
    %580 = vmatprep.subr.bf16.mxu0 0
    %581 = vmatpush1.bf16.msra.mxu0 0
    %582 = vmatprep.subr.bf16.mxu0 0
    %583 = vmatpush1.bf16.msra.mxu0 0
    %584 = vmatprep.subr.bf16.mxu0 0
    %585 = vmatpush1.bf16.msra.mxu0 0
    %586 = vmatprep.subr.bf16.mxu0 0
    %587 = vmatpush1.bf16.msra.mxu0 0
    %588 = vmatprep.subr.bf16.mxu0 0
    %589 = vmatpush1.bf16.msra.mxu0 0
    %590 = vmatprep.mubr.bf16.mxu0 0
    %591 = vmatmul.mubr.bf16.gmra.mrb[0].mxu0 %v171
    %v592 = vpop.f32.mrb[0].mxu0
    %v593 = vadd.f32 %v541, %v592
    %v594 = vpop.f32.mrb[0].mxu0
    %v595 = vpop.f32.mrb[0].mxu0
    %v596 = vadd.f32 %v544, %v595
    %v597 = vpop.f32.mrb[0].mxu0
    %598 = vmatprep.mubr.bf16.mxu0 0
    %599 = vmatmul.mubr.bf16.gmra.mrb[0].mxu0 %v174
    %v600 = vpop.f32.mrb[0].mxu0
    %v601 = vadd.f32 %v549, %v600
    %v602 = vpop.f32.mrb[0].mxu0
    %v603 = vpop.f32.mrb[0].mxu0
    %v604 = vadd.f32 %v552, %v603
    %v605 = vpop.f32.mrb[0].mxu0
    %606 = vdwg.mxu0
    %v607 = vld [vmem:[%s12] sm:$0xf]
    %v608 = vld [vmem:[%s12 + $0x4] sm:$0xf]
    %v609 = vld [vmem:[%s12 + $0x8] sm:$0xf]
    %v610 = vld [vmem:[%s12 + $0xc] sm:$0xf]
    %v615 = vunpack.c.l.b16 %v607
    %v616 = vunpack.c.l.b16 %v608
    %v617 = vunpack.c.l.b16 %v609
    %v618 = vunpack.c.l.b16 %v610
    %v619 = vpack.c.b16 %v616, %v615
    %v620 = vpack.c.b16 %v618, %v617
    %v624 = vsel %vm248, %v487, 0
    %v627 = vsel %vm248, %v488, 0
    %629 = vmatprep.subr.bf16.mxu0 0
    %630 = vmatpush1.bf16.msra.mxu0 %v619
    %631 = vmatprep.subr.bf16.mxu0 0
    %632 = vmatpush1.bf16.msra.mxu0 %v620
    %633 = vmatprep.subr.bf16.mxu0 0
    %634 = vmatpush1.bf16.msra.mxu0 0
    %635 = vmatprep.subr.bf16.mxu0 0
    %636 = vmatpush1.bf16.msra.mxu0 0
    %637 = vmatprep.subr.bf16.mxu0 0
    %638 = vmatpush1.bf16.msra.mxu0 0
    %639 = vmatprep.subr.bf16.mxu0 0
    %640 = vmatpush1.bf16.msra.mxu0 0
    %641 = vmatprep.subr.bf16.mxu0 0
    %642 = vmatpush1.bf16.msra.mxu0 0
    %643 = vmatprep.subr.bf16.mxu0 0
    %644 = vmatpush1.bf16.msra.mxu0 0
    %645 = vmatprep.subr.bf16.mxu0 0
    %646 = vmatpush1.bf16.msra.mxu0 0
    %647 = vmatprep.subr.bf16.mxu0 0
    %648 = vmatpush1.bf16.msra.mxu0 0
    %649 = vmatprep.subr.bf16.mxu0 0
    %650 = vmatpush1.bf16.msra.mxu0 0
    %651 = vmatprep.subr.bf16.mxu0 0
    %652 = vmatpush1.bf16.msra.mxu0 0
    %653 = vmatprep.subr.bf16.mxu0 0
    %654 = vmatpush1.bf16.msra.mxu0 0
    %655 = vmatprep.subr.bf16.mxu0 0
    %656 = vmatpush1.bf16.msra.mxu0 0
    %657 = vmatprep.subr.bf16.mxu0 0
    %658 = vmatpush1.bf16.msra.mxu0 0
    %659 = vmatprep.subr.bf16.mxu0 0
    %660 = vmatpush1.bf16.msra.mxu0 0
    %661 = vmatprep.mubr.bf16.mxu0 0
    %662 = vmatmul.mubr.bf16.gmra.mrb[0].mxu0 %v624
    %v663 = vpop.f32.mrb[0].mxu0
    %v664 = vadd.f32 0.0, %v663
    %v665 = vpop.f32.mrb[0].mxu0
    %v666 = vpop.f32.mrb[0].mxu0
    %v667 = vadd.f32 0.0, %v666
    %v668 = vpop.f32.mrb[0].mxu0
    %669 = vmatprep.mubr.bf16.mxu0 0
    %670 = vmatmul.mubr.bf16.gmra.mrb[0].mxu0 %v627
    %v671 = vpop.f32.mrb[0].mxu0
    %v672 = vadd.f32 0.0, %v671
    %v673 = vpop.f32.mrb[0].mxu0
    %v674 = vpop.f32.mrb[0].mxu0
    %v675 = vadd.f32 0.0, %v674
    %v676 = vpop.f32.mrb[0].mxu0
    %677 = vdwg.mxu0
    %v678 = vadd.f32 %v593, %v664
    %v679 = vadd.f32 %v596, %v667
    %v680 = vadd.f32 %v601, %v672
    %v681 = vadd.f32 %v604, %v675
    %v682 = vld [vmem:[%s13] sm:$0x1]
    %v684 = vlaneseq
    %v685 = vshrl.u32 %v684, 7
    %v686 = vsub.s32 0, %v685
    %v687 = vrot.slane %v682, %v686
    %v689 = vadd.f32 %v678, %v687
    %v690 = vadd.f32 %v679, %v687
    %v691 = vadd.f32 %v680, %v687
    %v692 = vadd.f32 %v681, %v687
    %v693 = vmax.f32 %v689, 0.0
    %v694 = vmax.f32 %v690, 0.0
    %v695 = vmax.f32 %v691, 0.0
    %v696 = vmax.f32 %v692, 0.0
    %v697 = vpack.c.bf16 %v694, %v693
    %v698 = vpack.c.bf16 %v696, %v695
    %v699 = vld [vmem:[#allocation14] sm:$0xf]
    %v700 = vld [vmem:[#allocation14 + $0x4] sm:$0xf]
    %v701 = vld [vmem:[#allocation14 + $0x8] sm:$0xf]
    %v702 = vld [vmem:[#allocation14 + $0xc] sm:$0xf]
    %v703 = vld [vmem:[%s15] sm:$0x1]
    %v705 = vlaneseq
    %v706 = vshrl.u32 %v705, 7
    %v707 = vsub.s32 0, %v706
    %v708 = vrot.slane %v703, %v707
    %v714 = vunpack.c.l.b16 %v699
    %v715 = vunpack.c.l.b16 %v700
    %v716 = vunpack.c.l.b16 %v701
    %v717 = vunpack.c.l.b16 %v702
    %v718 = vpack.c.b16 %v715, %v714
    %v719 = vpack.c.b16 %v717, %v716
    %v723 = vsel %vm248, %v697, 0
    %v726 = vsel %vm248, %v698, 0
    %728 = vmatprep.subr.bf16.mxu0 0
    %729 = vmatpush1.bf16.msra.mxu0 %v718
    %730 = vmatprep.subr.bf16.mxu0 0
    %731 = vmatpush1.bf16.msra.mxu0 %v719
    %732 = vmatprep.subr.bf16.mxu0 0
    %733 = vmatpush1.bf16.msra.mxu0 0
    %734 = vmatprep.subr.bf16.mxu0 0
    %735 = vmatpush1.bf16.msra.mxu0 0
    %736 = vmatprep.subr.bf16.mxu0 0
    %737 = vmatpush1.bf16.msra.mxu0 0
    %738 = vmatprep.subr.bf16.mxu0 0
    %739 = vmatpush1.bf16.msra.mxu0 0
    %740 = vmatprep.subr.bf16.mxu0 0
    %741 = vmatpush1.bf16.msra.mxu0 0
    %742 = vmatprep.subr.bf16.mxu0 0
    %743 = vmatpush1.bf16.msra.mxu0 0
    %744 = vmatprep.subr.bf16.mxu0 0
    %745 = vmatpush1.bf16.msra.mxu0 0
    %746 = vmatprep.subr.bf16.mxu0 0
    %747 = vmatpush1.bf16.msra.mxu0 0
    %748 = vmatprep.subr.bf16.mxu0 0
    %749 = vmatpush1.bf16.msra.mxu0 0
    %750 = vmatprep.subr.bf16.mxu0 0
    %751 = vmatpush1.bf16.msra.mxu0 0
    %752 = vmatprep.subr.bf16.mxu0 0
    %753 = vmatpush1.bf16.msra.mxu0 0
    %754 = vmatprep.subr.bf16.mxu0 0
    %755 = vmatpush1.bf16.msra.mxu0 0
    %756 = vmatprep.subr.bf16.mxu0 0
    %757 = vmatpush1.bf16.msra.mxu0 0
    %758 = vmatprep.subr.bf16.mxu0 0
    %759 = vmatpush1.bf16.msra.mxu0 0
    %760 = vmatprep.mubr.bf16.mxu0 0
    %761 = vmatmul.mubr.bf16.gmra.mrb[0].mxu0 %v723
    %v762 = vpop.f32.mrb[0].mxu0
    %v763 = vadd.f32 %v708, %v762
    %v764 = vpop.f32.mrb[0].mxu0
    %v765 = vpop.f32.mrb[0].mxu0
    %v766 = vadd.f32 %v708, %v765
    %v767 = vpop.f32.mrb[0].mxu0
    %768 = vmatprep.mubr.bf16.mxu0 0
    %769 = vmatmul.mubr.bf16.gmra.mrb[0].mxu0 %v726
    %v770 = vpop.f32.mrb[0].mxu0
    %v771 = vadd.f32 %v708, %v770
    %v772 = vpop.f32.mrb[0].mxu0
    %v773 = vpop.f32.mrb[0].mxu0
    %v774 = vadd.f32 %v708, %v773
    %v775 = vpop.f32.mrb[0].mxu0
    %776 = vdwg.mxu0
    %v777 = vmax.f32 %v763, 0.0
    %v778 = vmax.f32 %v766, 0.0
    %v779 = vmax.f32 %v771, 0.0
    %v780 = vmax.f32 %v774, 0.0
    %781 = vst [vmem:[#allocation16] sm:$0xff] %v777
    %782 = vst [vmem:[#allocation16 + $0x8] sm:$0xff] %v778
    %783 = vst [vmem:[#allocation16 + $0x10] sm:$0xff] %v779
    %784 = vst [vmem:[#allocation16 + $0x18] sm:$0xff] %v780
    // Predicated region
    $region98: #{tpu_custom_call.1} parent=1 // pred_check
      _
    $region99: #{tpu_custom_call.1} parent=1 // pred_check_branch
      %786 = sbr.rel (0) target = $region101
    $region100: #{tpu_custom_call.1} parent=1 // pred_region
      %s788 = ssub.s32 512, 512
      %789 = vsyncadd [#allocation4], %s788
      %s790 = sshll.u32 [#allocation16], 4
      %s791 = int_to_ptr.vmem [resolvable:$true] %s790
      %796 = dma.vmem_to_hbm [thread:$0]  %s791, 512, %s16, [#allocation4], 128, 128, 8
    $region101: #{tpu_custom_call.1} parent=1 // pred_fallthru
      _
    // Predicated region
    $region102: #{tpu_custom_call.1} parent=1 // pred_check
      _
    $region103: #{tpu_custom_call.1} parent=1 // pred_check_branch
      %798 = sbr.rel (0) target = $region105
    $region104: #{tpu_custom_call.1} parent=1 // pred_region
      %799 = dma.done [#allocation4], 512
    $region105: #{tpu_custom_call.1} parent=1 // pred_fallthru
      _
    %800 = vsyncpa [#allocation3], 1
    %801 = vsyncpa [#allocation6], 1
    %802 = vsyncpa [#allocation9], 1
    %803 = vsyncpa [#allocation12], 1
    %804 = vsyncpa [#allocation15], 1
    %805 = vsyncpa [#allocation4], 1

</llo_original>
